<compile_context>
chip_gen: v7x
topology: tpu7x:2x2x1
jax: 0.10.0
libtpu: 0.0.40
codegen_flags: <defaults>
</compile_context>

<pallas_src>
import jax
import jax.numpy as jnp
from jax.experimental import pallas as pl
from jax.experimental.pallas import tpu as pltpu

_LANES = 128  # lane-dense width for the weight slab / output


def char_lstm_kernel(tok_ref, table_ref, w_ref, l_ref, out_ref):
    """Fused token gather + LSTM recurrence + fc/mlp epilogue (one grid point).

    tok_ref   : (T*B, 1) int32  token ids, time-major (row = t*B + b)
    table_ref : (V, 4H)  f32    embedding @ W_ih.T + (b_ih + b_hh), gates (i,f,o,g)
    w_ref     : (2H+2, 128) f32 stacked weights:
                  rows [0, H)   : W_hh.T          (lanes [0, 4H))
                  rows [H, 2H)  : fc/mlp_x fold    (lanes [0, O))
                  row  2H       : mlp l-column     (lanes [0, O))
                  row  2H+1     : folded bias      (lanes [0, O))
    l_ref     : (B, 1)   f32
    out_ref   : (B, 128) f32    lane-dense output slab (first O lanes valid)
    """
    TB = tok_ref.shape[0]
    V, H4 = table_ref.shape
    H = H4 // 4
    B = out_ref.shape[0]
    T = TB // B

    # ---- In-kernel token gather: one-hot @ table (exact row pick, f32),
    #      computed once, off the serial recurrence path. ----
    tok = tok_ref[...]                                                # (T*B, 1)
    vocab_iota = jax.lax.broadcasted_iota(jnp.int32, (TB, V), 1)
    onehot = (tok == vocab_iota).astype(jnp.float32)                  # (T*B, V)
    gx = jnp.dot(onehot, table_ref[...],
                 preferred_element_type=jnp.float32)                  # (T*B, 4H)

    # ---- Hoisted constants (shared across all unrolled steps). ----
    w_all = w_ref[...]
    w_hh_bf = w_all[0:H, 0:H4].astype(jnp.bfloat16)        # (H, 4H) MXU weights
    wc_bf = w_all[H:2 * H, :].astype(jnp.bfloat16)         # (H, 128)
    w_l = w_all[2 * H:2 * H + 1, :]                        # (1, 128) f32
    b_c = w_all[2 * H + 1:2 * H + 2, :]                    # (1, 128) f32

    # sigmoid(x) = 0.5*tanh(0.5*x) + 0.5 : one vreg-wide tanh covers the three
    # sigmoid gate blocks [0, 3H) and the candidate tanh block [3H, 4H).
    lane = jax.lax.broadcasted_iota(jnp.int32, (B, H4), 1)
    sig_scale = jnp.where(lane < 3 * H, 0.5, 1.0)          # pre & post multiplier
    sig_shift = jnp.where(lane < 3 * H, 0.5, 0.0)          # post offset

    def step(gates, c_prev):
        act = jnp.tanh(gates * sig_scale) * sig_scale + sig_shift
        i = act[:, 0:H]
        f = act[:, H:2 * H]
        o = act[:, 2 * H:3 * H]
        g = act[:, 3 * H:4 * H]
        c = f * c_prev + i * g
        h = o * jnp.tanh(c)
        return h, c

    # t = 0: h == 0, so the recurrent matmul contributes nothing -- skip it.
    h, c = step(gx[0:B, :], jnp.zeros((B, H), jnp.float32))

    # Static unroll over the small remaining sequence; only h @ W_hh.T (bf16
    # operands, f32 accumulation) stays on the serial critical path.
    for t in range(1, T):
        gates = gx[t * B:(t + 1) * B, :] + jnp.dot(
            h.astype(jnp.bfloat16), w_hh_bf, preferred_element_type=jnp.float32)
        h, c = step(gates, c)

    # Fused fc + mlp epilogue:  out = h @ W_comb + l * w_l + b_comb.
    out_ref[...] = (jnp.dot(h.astype(jnp.bfloat16), wc_bf,
                            preferred_element_type=jnp.float32)
                    + l_ref[...] * w_l + b_c)


def init_params(key, vocab_size, embed_size, hidden_size, output_size):
    ks = jax.random.split(key, 9)
    kh = 1.0 / jnp.sqrt(hidden_size)
    ko = 1.0 / jnp.sqrt(output_size + 1)

    def u(k, shape, bound):
        return jax.random.uniform(k, shape, jnp.float32, -bound, bound)

    return dict(
        embedding=jax.random.normal(ks[0], (vocab_size, embed_size), jnp.float32),
        w_ih=u(ks[1], (4 * hidden_size, embed_size), kh),   # PyTorch gate order i,f,g,o
        w_hh=u(ks[2], (4 * hidden_size, hidden_size), kh),
        b_ih=u(ks[3], (4 * hidden_size,), kh),
        b_hh=u(ks[4], (4 * hidden_size,), kh),
        fc_w=u(ks[5], (output_size, hidden_size), kh),
        fc_b=u(ks[6], (output_size,), kh),
        mlp_w=u(ks[7], (output_size, output_size + 1), ko),
        mlp_b=u(ks[8], (output_size,), ko),
    )


def prepare_model(params):
    """One-time, param-only preprocessing (hoisted out of the per-call path)."""
    H = params["w_hh"].shape[1]
    O = params["fc_w"].shape[0]
    assert 4 * H <= _LANES and O <= _LANES

    def reorder(m):
        # PyTorch LSTM gate row order (i, f, g, o) -> (i, f, o, g).
        return jnp.concatenate([m[0:2 * H], m[3 * H:4 * H], m[2 * H:3 * H]], axis=0)

    w_ih_r = reorder(params["w_ih"])                              # (4H, E)
    w_hh_r = reorder(params["w_hh"])                              # (4H, H)
    b_r = reorder(params["b_ih"] + params["b_hh"])                # (4H,)

    # Per-vocab table: embedding @ W_ih.T + (b_ih + b_hh), gate order (i,f,o,g).
    table = (params["embedding"] @ w_ih_r.T + b_r[None, :]).astype(jnp.float32)

    # Fold fc and the mlp's x-columns (dropout is identity at eval); the scalar
    # feature l is concatenated LAST, so its mlp column is mlp_w[:, O].
    mlp_w = params["mlp_w"]                                       # (O, O+1)
    mlp_w_x = mlp_w[:, :O]                                        # (O, O)
    w_l = mlp_w[:, O]                                             # (O,)
    wc = params["fc_w"].T @ mlp_w_x.T                             # (H, O)
    b_c = params["fc_b"] @ mlp_w_x.T + params["mlp_b"]            # (O,)

    pad = lambda m: jnp.pad(m, ((0, 0), (0, _LANES - m.shape[1])))
    wstack = jnp.concatenate([
        pad(w_hh_r.T),                # rows [0, H)   recurrent weights (H, 4H)
        pad(wc),                      # rows [H, 2H)  folded fc/mlp weight
        pad(w_l.reshape(1, O)),       # row  2H       l column
        pad(b_c.reshape(1, O)),       # row  2H+1     folded bias
    ], axis=0).astype(jnp.float32)                                # (2H+2, 128)

    return table, wstack, O


def character_level_forward(table, wstack, x_tokens, l, *, output_size):
    B, T = x_tokens.shape
    # Time-major token ids; row t*B + b.  Tiny per-call reshuffle of ints.
    tok = jnp.transpose(x_tokens, (1, 0)).reshape(T * B, 1).astype(jnp.int32)
    l2 = l.reshape(B, 1).astype(jnp.float32)

    vmem = pl.BlockSpec(memory_space=pltpu.MemorySpace.VMEM)
    out_pad = pl.pallas_call(
        char_lstm_kernel,
        out_shape=jax.ShapeDtypeStruct((B, _LANES), jnp.float32),
        in_specs=[vmem, vmem, vmem, vmem],
        out_specs=vmem,
    )(tok, table, wstack, l2)
    return out_pad[:, :output_size]


if __name__ == "__main__":
    vocab_size, embed_size, hidden_size, output_size = 32, 16, 32, 8
    B, T = 2, 8

    key = jax.random.PRNGKey(0)
    k_params, k_x, k_l = jax.random.split(key, 3)

    params = init_params(k_params, vocab_size, embed_size, hidden_size, output_size)
    table, wstack, O = prepare_model(params)   # one-time prep, hoisted

    x_tokens = jax.random.randint(k_x, (B, T), 0, vocab_size, dtype=jnp.int32)
    l = jax.random.normal(k_l, (B,), jnp.float32)

    fwd = jax.jit(lambda tok, lv: character_level_forward(
        table, wstack, tok, lv, output_size=O))

    out = fwd(x_tokens, l)
    jax.block_until_ready(out)
    assert out.shape == (B, output_size)
    print("KERNEL_OK")
</pallas_src>

<mosaic_0001>
module attributes {stable_mosaic.version = 11 : i64} {
  func.func @char_lstm_kernel(%arg0: memref<16x1xi32, #tpu.memory_space<vmem>>, %arg1: memref<32x128xf32, #tpu.memory_space<vmem>>, %arg2: memref<66x128xf32, #tpu.memory_space<vmem>>, %arg3: memref<2x1xf32, #tpu.memory_space<vmem>>, %arg4: memref<2x128xf32, #tpu.memory_space<vmem>>) attributes {dimension_semantics = [], scalar_prefetch = 0 : i64, scratch_operands = 0 : i64, tpu.core_type = #tpu.core_type<tc>} {
    %c0 = arith.constant 0 : index
    %c0_0 = arith.constant 0 : index
    %0 = vector.load %arg0[%c0, %c0_0] : memref<16x1xi32, #tpu.memory_space<vmem>>, vector<16x1xi32>
    %1 = tpu.iota {dimensions = array<i32: 1>} : vector<16x32xi32>
    %2 = vector.broadcast %0 : vector<16x1xi32> to vector<16x32xi32>
    %3 = arith.cmpi eq, %2, %1 : vector<16x32xi32>
    %4 = arith.extui %3 : vector<16x32xi1> to vector<16x32xi32>
    %5 = arith.sitofp %4 : vector<16x32xi32> to vector<16x32xf32>
    %c0_1 = arith.constant 0 : index
    %c0_2 = arith.constant 0 : index
    %6 = vector.load %arg1[%c0_1, %c0_2] : memref<32x128xf32, #tpu.memory_space<vmem>>, vector<32x128xf32>
    %cst = arith.constant dense<0.000000e+00> : vector<16x128xf32>
    %7 = tpu.matmul %5, %6, %cst {dimension_numbers = #tpu.dot_dimension_numbers<[1], [0], [0], [1], [0, 0, 1, 1], [], []>} : vector<16x32xf32>, vector<32x128xf32>, vector<16x128xf32> -> vector<16x128xf32>
    %c0_3 = arith.constant 0 : index
    %c0_4 = arith.constant 0 : index
    %8 = vector.load %arg2[%c0_3, %c0_4] : memref<66x128xf32, #tpu.memory_space<vmem>>, vector<66x128xf32>
    %9 = vector.extract_strided_slice %8 {offsets = [0, 0], sizes = [32, 128], strides = [1, 1]} : vector<66x128xf32> to vector<32x128xf32>
    %10 = arith.truncf %9 : vector<32x128xf32> to vector<32x128xbf16>
    %11 = vector.extract_strided_slice %8 {offsets = [32, 0], sizes = [32, 128], strides = [1, 1]} : vector<66x128xf32> to vector<32x128xf32>
    %12 = arith.truncf %11 : vector<32x128xf32> to vector<32x128xbf16>
    %13 = vector.extract_strided_slice %8 {offsets = [64, 0], sizes = [1, 128], strides = [1, 1]} : vector<66x128xf32> to vector<1x128xf32>
    %14 = vector.extract_strided_slice %8 {offsets = [65, 0], sizes = [1, 128], strides = [1, 1]} : vector<66x128xf32> to vector<1x128xf32>
    %15 = tpu.iota {dimensions = array<i32: 1>} : vector<2x128xi32>
    %c96_i32 = arith.constant 96 : i32
    %16 = vector.broadcast %c96_i32 : i32 to vector<2x128xi32>
    %17 = arith.cmpi slt, %15, %16 : vector<2x128xi32>
    %cst_5 = arith.constant 5.000000e-01 : f32
    %cst_6 = arith.constant 1.000000e+00 : f32
    %18 = vector.broadcast %cst_5 : f32 to vector<2x128xf32>
    %19 = vector.broadcast %cst_6 : f32 to vector<2x128xf32>
    %20 = arith.select %17, %18, %19 : vector<2x128xi1>, vector<2x128xf32>
    %c96_i32_7 = arith.constant 96 : i32
    %21 = vector.broadcast %c96_i32_7 : i32 to vector<2x128xi32>
    %22 = arith.cmpi slt, %15, %21 : vector<2x128xi32>
    %cst_8 = arith.constant 5.000000e-01 : f32
    %cst_9 = arith.constant 0.000000e+00 : f32
    %23 = vector.broadcast %cst_8 : f32 to vector<2x128xf32>
    %24 = vector.broadcast %cst_9 : f32 to vector<2x128xf32>
    %25 = arith.select %22, %23, %24 : vector<2x128xi1>, vector<2x128xf32>
    %26 = vector.extract_strided_slice %7 {offsets = [0, 0], sizes = [2, 128], strides = [1, 1]} : vector<16x128xf32> to vector<2x128xf32>
    %cst_10 = arith.constant 0.000000e+00 : f32
    %27 = vector.broadcast %cst_10 : f32 to vector<2x32xf32>
    %28 = arith.mulf %26, %20 : vector<2x128xf32>
    %29 = math.tanh %28 : vector<2x128xf32>
    %30 = arith.mulf %29, %20 : vector<2x128xf32>
    %31 = arith.addf %30, %25 : vector<2x128xf32>
    %32 = vector.extract_strided_slice %31 {offsets = [0, 0], sizes = [2, 32], strides = [1, 1]} : vector<2x128xf32> to vector<2x32xf32>
    %33 = vector.extract_strided_slice %31 {offsets = [0, 32], sizes = [2, 32], strides = [1, 1]} : vector<2x128xf32> to vector<2x32xf32>
    %34 = vector.extract_strided_slice %31 {offsets = [0, 64], sizes = [2, 32], strides = [1, 1]} : vector<2x128xf32> to vector<2x32xf32>
    %35 = vector.extract_strided_slice %31 {offsets = [0, 96], sizes = [2, 32], strides = [1, 1]} : vector<2x128xf32> to vector<2x32xf32>
    %36 = arith.mulf %33, %27 : vector<2x32xf32>
    %37 = arith.mulf %32, %35 : vector<2x32xf32>
    %38 = arith.addf %36, %37 : vector<2x32xf32>
    %39 = math.tanh %38 : vector<2x32xf32>
    %40 = arith.mulf %34, %39 : vector<2x32xf32>
    %41 = vector.extract_strided_slice %7 {offsets = [2, 0], sizes = [2, 128], strides = [1, 1]} : vector<16x128xf32> to vector<2x128xf32>
    %42 = arith.truncf %40 : vector<2x32xf32> to vector<2x32xbf16>
    %cst_11 = arith.constant dense<0.000000e+00> : vector<2x128xf32>
    %43 = tpu.matmul %42, %10, %cst_11 {dimension_numbers = #tpu.dot_dimension_numbers<[1], [0], [0], [1], [0, 0, 1, 1], [], []>} : vector<2x32xbf16>, vector<32x128xbf16>, vector<2x128xf32> -> vector<2x128xf32>
    %44 = arith.addf %41, %43 : vector<2x128xf32>
    %45 = arith.mulf %44, %20 : vector<2x128xf32>
    %46 = math.tanh %45 : vector<2x128xf32>
    %47 = arith.mulf %46, %20 : vector<2x128xf32>
    %48 = arith.addf %47, %25 : vector<2x128xf32>
    %49 = vector.extract_strided_slice %48 {offsets = [0, 0], sizes = [2, 32], strides = [1, 1]} : vector<2x128xf32> to vector<2x32xf32>
    %50 = vector.extract_strided_slice %48 {offsets = [0, 32], sizes = [2, 32], strides = [1, 1]} : vector<2x128xf32> to vector<2x32xf32>
    %51 = vector.extract_strided_slice %48 {offsets = [0, 64], sizes = [2, 32], strides = [1, 1]} : vector<2x128xf32> to vector<2x32xf32>
    %52 = vector.extract_strided_slice %48 {offsets = [0, 96], sizes = [2, 32], strides = [1, 1]} : vector<2x128xf32> to vector<2x32xf32>
    %53 = arith.mulf %50, %38 : vector<2x32xf32>
    %54 = arith.mulf %49, %52 : vector<2x32xf32>
    %55 = arith.addf %53, %54 : vector<2x32xf32>
    %56 = math.tanh %55 : vector<2x32xf32>
    %57 = arith.mulf %51, %56 : vector<2x32xf32>
    %58 = vector.extract_strided_slice %7 {offsets = [4, 0], sizes = [2, 128], strides = [1, 1]} : vector<16x128xf32> to vector<2x128xf32>
    %59 = arith.truncf %57 : vector<2x32xf32> to vector<2x32xbf16>
    %cst_12 = arith.constant dense<0.000000e+00> : vector<2x128xf32>
    %60 = tpu.matmul %59, %10, %cst_12 {dimension_numbers = #tpu.dot_dimension_numbers<[1], [0], [0], [1], [0, 0, 1, 1], [], []>} : vector<2x32xbf16>, vector<32x128xbf16>, vector<2x128xf32> -> vector<2x128xf32>
    %61 = arith.addf %58, %60 : vector<2x128xf32>
    %62 = arith.mulf %61, %20 : vector<2x128xf32>
    %63 = math.tanh %62 : vector<2x128xf32>
    %64 = arith.mulf %63, %20 : vector<2x128xf32>
    %65 = arith.addf %64, %25 : vector<2x128xf32>
    %66 = vector.extract_strided_slice %65 {offsets = [0, 0], sizes = [2, 32], strides = [1, 1]} : vector<2x128xf32> to vector<2x32xf32>
    %67 = vector.extract_strided_slice %65 {offsets = [0, 32], sizes = [2, 32], strides = [1, 1]} : vector<2x128xf32> to vector<2x32xf32>
    %68 = vector.extract_strided_slice %65 {offsets = [0, 64], sizes = [2, 32], strides = [1, 1]} : vector<2x128xf32> to vector<2x32xf32>
    %69 = vector.extract_strided_slice %65 {offsets = [0, 96], sizes = [2, 32], strides = [1, 1]} : vector<2x128xf32> to vector<2x32xf32>
    %70 = arith.mulf %67, %55 : vector<2x32xf32>
    %71 = arith.mulf %66, %69 : vector<2x32xf32>
    %72 = arith.addf %70, %71 : vector<2x32xf32>
    %73 = math.tanh %72 : vector<2x32xf32>
    %74 = arith.mulf %68, %73 : vector<2x32xf32>
    %75 = vector.extract_strided_slice %7 {offsets = [6, 0], sizes = [2, 128], strides = [1, 1]} : vector<16x128xf32> to vector<2x128xf32>
    %76 = arith.truncf %74 : vector<2x32xf32> to vector<2x32xbf16>
    %cst_13 = arith.constant dense<0.000000e+00> : vector<2x128xf32>
    %77 = tpu.matmul %76, %10, %cst_13 {dimension_numbers = #tpu.dot_dimension_numbers<[1], [0], [0], [1], [0, 0, 1, 1], [], []>} : vector<2x32xbf16>, vector<32x128xbf16>, vector<2x128xf32> -> vector<2x128xf32>
    %78 = arith.addf %75, %77 : vector<2x128xf32>
    %79 = arith.mulf %78, %20 : vector<2x128xf32>
    %80 = math.tanh %79 : vector<2x128xf32>
    %81 = arith.mulf %80, %20 : vector<2x128xf32>
    %82 = arith.addf %81, %25 : vector<2x128xf32>
    %83 = vector.extract_strided_slice %82 {offsets = [0, 0], sizes = [2, 32], strides = [1, 1]} : vector<2x128xf32> to vector<2x32xf32>
    %84 = vector.extract_strided_slice %82 {offsets = [0, 32], sizes = [2, 32], strides = [1, 1]} : vector<2x128xf32> to vector<2x32xf32>
    %85 = vector.extract_strided_slice %82 {offsets = [0, 64], sizes = [2, 32], strides = [1, 1]} : vector<2x128xf32> to vector<2x32xf32>
    %86 = vector.extract_strided_slice %82 {offsets = [0, 96], sizes = [2, 32], strides = [1, 1]} : vector<2x128xf32> to vector<2x32xf32>
    %87 = arith.mulf %84, %72 : vector<2x32xf32>
    %88 = arith.mulf %83, %86 : vector<2x32xf32>
    %89 = arith.addf %87, %88 : vector<2x32xf32>
    %90 = math.tanh %89 : vector<2x32xf32>
    %91 = arith.mulf %85, %90 : vector<2x32xf32>
    %92 = vector.extract_strided_slice %7 {offsets = [8, 0], sizes = [2, 128], strides = [1, 1]} : vector<16x128xf32> to vector<2x128xf32>
    %93 = arith.truncf %91 : vector<2x32xf32> to vector<2x32xbf16>
    %cst_14 = arith.constant dense<0.000000e+00> : vector<2x128xf32>
    %94 = tpu.matmul %93, %10, %cst_14 {dimension_numbers = #tpu.dot_dimension_numbers<[1], [0], [0], [1], [0, 0, 1, 1], [], []>} : vector<2x32xbf16>, vector<32x128xbf16>, vector<2x128xf32> -> vector<2x128xf32>
    %95 = arith.addf %92, %94 : vector<2x128xf32>
    %96 = arith.mulf %95, %20 : vector<2x128xf32>
    %97 = math.tanh %96 : vector<2x128xf32>
    %98 = arith.mulf %97, %20 : vector<2x128xf32>
    %99 = arith.addf %98, %25 : vector<2x128xf32>
    %100 = vector.extract_strided_slice %99 {offsets = [0, 0], sizes = [2, 32], strides = [1, 1]} : vector<2x128xf32> to vector<2x32xf32>
    %101 = vector.extract_strided_slice %99 {offsets = [0, 32], sizes = [2, 32], strides = [1, 1]} : vector<2x128xf32> to vector<2x32xf32>
    %102 = vector.extract_strided_slice %99 {offsets = [0, 64], sizes = [2, 32], strides = [1, 1]} : vector<2x128xf32> to vector<2x32xf32>
    %103 = vector.extract_strided_slice %99 {offsets = [0, 96], sizes = [2, 32], strides = [1, 1]} : vector<2x128xf32> to vector<2x32xf32>
    %104 = arith.mulf %101, %89 : vector<2x32xf32>
    %105 = arith.mulf %100, %103 : vector<2x32xf32>
    %106 = arith.addf %104, %105 : vector<2x32xf32>
    %107 = math.tanh %106 : vector<2x32xf32>
    %108 = arith.mulf %102, %107 : vector<2x32xf32>
    %109 = vector.extract_strided_slice %7 {offsets = [10, 0], sizes = [2, 128], strides = [1, 1]} : vector<16x128xf32> to vector<2x128xf32>
    %110 = arith.truncf %108 : vector<2x32xf32> to vector<2x32xbf16>
    %cst_15 = arith.constant dense<0.000000e+00> : vector<2x128xf32>
    %111 = tpu.matmul %110, %10, %cst_15 {dimension_numbers = #tpu.dot_dimension_numbers<[1], [0], [0], [1], [0, 0, 1, 1], [], []>} : vector<2x32xbf16>, vector<32x128xbf16>, vector<2x128xf32> -> vector<2x128xf32>
    %112 = arith.addf %109, %111 : vector<2x128xf32>
    %113 = arith.mulf %112, %20 : vector<2x128xf32>
    %114 = math.tanh %113 : vector<2x128xf32>
    %115 = arith.mulf %114, %20 : vector<2x128xf32>
    %116 = arith.addf %115, %25 : vector<2x128xf32>
    %117 = vector.extract_strided_slice %116 {offsets = [0, 0], sizes = [2, 32], strides = [1, 1]} : vector<2x128xf32> to vector<2x32xf32>
    %118 = vector.extract_strided_slice %116 {offsets = [0, 32], sizes = [2, 32], strides = [1, 1]} : vector<2x128xf32> to vector<2x32xf32>
    %119 = vector.extract_strided_slice %116 {offsets = [0, 64], sizes = [2, 32], strides = [1, 1]} : vector<2x128xf32> to vector<2x32xf32>
    %120 = vector.extract_strided_slice %116 {offsets = [0, 96], sizes = [2, 32], strides = [1, 1]} : vector<2x128xf32> to vector<2x32xf32>
    %121 = arith.mulf %118, %106 : vector<2x32xf32>
    %122 = arith.mulf %117, %120 : vector<2x32xf32>
    %123 = arith.addf %121, %122 : vector<2x32xf32>
    %124 = math.tanh %123 : vector<2x32xf32>
    %125 = arith.mulf %119, %124 : vector<2x32xf32>
    %126 = vector.extract_strided_slice %7 {offsets = [12, 0], sizes = [2, 128], strides = [1, 1]} : vector<16x128xf32> to vector<2x128xf32>
    %127 = arith.truncf %125 : vector<2x32xf32> to vector<2x32xbf16>
    %cst_16 = arith.constant dense<0.000000e+00> : vector<2x128xf32>
    %128 = tpu.matmul %127, %10, %cst_16 {dimension_numbers = #tpu.dot_dimension_numbers<[1], [0], [0], [1], [0, 0, 1, 1], [], []>} : vector<2x32xbf16>, vector<32x128xbf16>, vector<2x128xf32> -> vector<2x128xf32>
    %129 = arith.addf %126, %128 : vector<2x128xf32>
    %130 = arith.mulf %129, %20 : vector<2x128xf32>
    %131 = math.tanh %130 : vector<2x128xf32>
    %132 = arith.mulf %131, %20 : vector<2x128xf32>
    %133 = arith.addf %132, %25 : vector<2x128xf32>
    %134 = vector.extract_strided_slice %133 {offsets = [0, 0], sizes = [2, 32], strides = [1, 1]} : vector<2x128xf32> to vector<2x32xf32>
    %135 = vector.extract_strided_slice %133 {offsets = [0, 32], sizes = [2, 32], strides = [1, 1]} : vector<2x128xf32> to vector<2x32xf32>
    %136 = vector.extract_strided_slice %133 {offsets = [0, 64], sizes = [2, 32], strides = [1, 1]} : vector<2x128xf32> to vector<2x32xf32>
    %137 = vector.extract_strided_slice %133 {offsets = [0, 96], sizes = [2, 32], strides = [1, 1]} : vector<2x128xf32> to vector<2x32xf32>
    %138 = arith.mulf %135, %123 : vector<2x32xf32>
    %139 = arith.mulf %134, %137 : vector<2x32xf32>
    %140 = arith.addf %138, %139 : vector<2x32xf32>
    %141 = math.tanh %140 : vector<2x32xf32>
    %142 = arith.mulf %136, %141 : vector<2x32xf32>
    %143 = vector.extract_strided_slice %7 {offsets = [14, 0], sizes = [2, 128], strides = [1, 1]} : vector<16x128xf32> to vector<2x128xf32>
    %144 = arith.truncf %142 : vector<2x32xf32> to vector<2x32xbf16>
    %cst_17 = arith.constant dense<0.000000e+00> : vector<2x128xf32>
    %145 = tpu.matmul %144, %10, %cst_17 {dimension_numbers = #tpu.dot_dimension_numbers<[1], [0], [0], [1], [0, 0, 1, 1], [], []>} : vector<2x32xbf16>, vector<32x128xbf16>, vector<2x128xf32> -> vector<2x128xf32>
    %146 = arith.addf %143, %145 : vector<2x128xf32>
    %147 = arith.mulf %146, %20 : vector<2x128xf32>
    %148 = math.tanh %147 : vector<2x128xf32>
    %149 = arith.mulf %148, %20 : vector<2x128xf32>
    %150 = arith.addf %149, %25 : vector<2x128xf32>
    %151 = vector.extract_strided_slice %150 {offsets = [0, 0], sizes = [2, 32], strides = [1, 1]} : vector<2x128xf32> to vector<2x32xf32>
    %152 = vector.extract_strided_slice %150 {offsets = [0, 32], sizes = [2, 32], strides = [1, 1]} : vector<2x128xf32> to vector<2x32xf32>
    %153 = vector.extract_strided_slice %150 {offsets = [0, 64], sizes = [2, 32], strides = [1, 1]} : vector<2x128xf32> to vector<2x32xf32>
    %154 = vector.extract_strided_slice %150 {offsets = [0, 96], sizes = [2, 32], strides = [1, 1]} : vector<2x128xf32> to vector<2x32xf32>
    %155 = arith.mulf %152, %140 : vector<2x32xf32>
    %156 = arith.mulf %151, %154 : vector<2x32xf32>
    %157 = arith.addf %155, %156 : vector<2x32xf32>
    %158 = math.tanh %157 : vector<2x32xf32>
    %159 = arith.mulf %153, %158 : vector<2x32xf32>
    %160 = arith.truncf %159 : vector<2x32xf32> to vector<2x32xbf16>
    %cst_18 = arith.constant dense<0.000000e+00> : vector<2x128xf32>
    %161 = tpu.matmul %160, %12, %cst_18 {dimension_numbers = #tpu.dot_dimension_numbers<[1], [0], [0], [1], [0, 0, 1, 1], [], []>} : vector<2x32xbf16>, vector<32x128xbf16>, vector<2x128xf32> -> vector<2x128xf32>
    %c0_19 = arith.constant 0 : index
    %c0_20 = arith.constant 0 : index
    %162 = vector.load %arg3[%c0_19, %c0_20] : memref<2x1xf32, #tpu.memory_space<vmem>>, vector<2x1xf32>
    %163 = vector.broadcast %162 : vector<2x1xf32> to vector<2x128xf32>
    %164 = vector.broadcast %13 : vector<1x128xf32> to vector<2x128xf32>
    %165 = arith.mulf %163, %164 : vector<2x128xf32>
    %166 = arith.addf %161, %165 : vector<2x128xf32>
    %167 = vector.broadcast %14 : vector<1x128xf32> to vector<2x128xf32>
    %168 = arith.addf %166, %167 : vector<2x128xf32>
    %c0_21 = arith.constant 0 : index
    %c0_22 = arith.constant 0 : index
    %169 = vector.load %arg4[%c0_21, %c0_22] : memref<2x128xf32, #tpu.memory_space<vmem>>, vector<2x128xf32>
    tpu.vector_store %arg4[%c0_21, %c0_22], %168 {strides = array<i32>} : memref<2x128xf32, #tpu.memory_space<vmem>>, vector<2x128xf32>,
    return
  }
}

</mosaic_0001>

<llo_original>
// kernel: _lambda_.1
$region0: #{_lambda_.1}
  #allocation0 [shape = 'u32[]', space=smem, size = 0x4, offset = 0x4, fixed_abs, tag = 'smem constant byte address 0x4 - core index']
  #allocation1 [shape = 'u32[144,128]{1,0:T(1,128)}', space=vmem, size = 0x12000, scoped, tag = 'internal scratch']
  %s0 = inlined_call_operand.vmem [shape: s32[16,1], index: 0, kind: input, shape index: {}]
  %s1 = inlined_call_operand.vmem [shape: f32[32,128], index: 1, kind: input, shape index: {}]
  %s2 = inlined_call_operand.hbm [shape: f32[66,128], index: 2, kind: input, shape index: {}]
  %s3 = inlined_call_operand.vmem [shape: f32[2,1], index: 3, kind: input, shape index: {}]
  %s4 = inlined_call_operand.hbm [shape: f32[2,128], index: 4, kind: output, shape index: {}]
  %s5 = sld [smem:[#allocation0]]
  $region30: #{_lambda_.1} parent=0
    _
  %s7 = ssub.s32 1, %s5
  %s8 = scalar_select 0, %s7, %s5
  $region1: #{_lambda_.1} parent=0
    #allocation2 [shape = 'u8[36864]{0}', space=vmem, size = 0x9000, scoped, tag = 'input window, operand 2, single buffered']
    #allocation3 [shape = 's32[1]{0}', space=sflag, size = 0x4, scoped, tag = 'scoped memory for _lambda_.1']
    #allocation4 [shape = 's32[1]{0}', space=sflag, size = 0x4, scoped, tag = 'scoped memory for _lambda_.1']
    #allocation5 [shape = 'u8[1024]{0}', space=vmem, size = 0x400, scoped, tag = 'output window, operand 0, single buffered']
    %9 = vsyncpa [#allocation3], 0
    %10 = vsyncpa [#allocation4], 0
    // Predicated region
    $region2: #{_lambda_.1} parent=1 // pred_check
      _
    $region3: #{_lambda_.1} parent=1 // pred_check_branch
      %12 = sbr.rel (0) target = $region5
    $region4: #{_lambda_.1} parent=1 // pred_region
      _
    $region5: #{_lambda_.1} parent=1 // pred_fallthru
      _
    // Predicated region
    $region6: #{_lambda_.1} parent=1 // pred_check
      _
    $region7: #{_lambda_.1} parent=1 // pred_check_branch
      %14 = sbr.rel (0) target = $region9
    $region8: #{_lambda_.1} parent=1 // pred_region
      _
    $region9: #{_lambda_.1} parent=1 // pred_fallthru
      _
    // Predicated region
    $region10: #{_lambda_.1} parent=1 // pred_check
      _
    $region11: #{_lambda_.1} parent=1 // pred_check_branch
      %16 = sbr.rel (0) target = $region13
    $region12: #{_lambda_.1} parent=1 // pred_region
      %s18 = ssub.s32 1152, 1152
      %19 = vsyncadd [#allocation3], %s18
      %s20 = sshll.u32 [#allocation2], 4
      %s21 = int_to_ptr.vmem [resolvable:$true] %s20
      %26 = dma.hbm_to_vmem [thread:$0]  %s2, 1152, %s21, [#allocation3], 128, 128, 8
    $region13: #{_lambda_.1} parent=1 // pred_fallthru
      _
    // Predicated region
    $region14: #{_lambda_.1} parent=1 // pred_check
      _
    $region15: #{_lambda_.1} parent=1 // pred_check_branch
      %28 = sbr.rel (0) target = $region17
    $region16: #{_lambda_.1} parent=1 // pred_region
      _
    $region17: #{_lambda_.1} parent=1 // pred_fallthru
      _
    // Predicated region
    $region18: #{_lambda_.1} parent=1 // pred_check
      _
    $region19: #{_lambda_.1} parent=1 // pred_check_branch
      %30 = sbr.rel (0) target = $region21
    $region20: #{_lambda_.1} parent=1 // pred_region
      %31 = dma.done [#allocation3], 1152
    $region21: #{_lambda_.1} parent=1 // pred_fallthru
      _
    %v33 = vld [vmem:[%s0] sm:$0xff]
    %v34 = vld [vmem:[%s0 + $0x8] sm:$0xff]
    %v35 = vlaneseq
    %v36 = vand.u32 %v35, 127
    %37 = vset.pattern.permute.xlu0 0
    %38 = vperm.xlu0 %37, %v33
    %v39 = vpop.permute.xlu0 %38
    %40 = vset.pattern.permute.xlu0 0
    %41 = vperm.xlu0 %40, %v34
    %v42 = vpop.permute.xlu0 %41
    %vm43 = vcmp.eq.s32.totalorder %v39, %v36
    %vm44 = vcmp.eq.s32.totalorder %v42, %v36
    %v45 = vsel %vm43, 1, 0
    %v46 = vsel %vm44, 1, 0
    %v47 = vcvt.s32.f32 %v45
    %v48 = vcvt.s32.f32 %v46
    %v49 = vld [vmem:[%s1] sm:$0xff]
    %v50 = vld [vmem:[%s1 + $0x8] sm:$0xff]
    %v51 = vld [vmem:[%s1 + $0x10] sm:$0xff]
    %v52 = vld [vmem:[%s1 + $0x18] sm:$0xff]
    %vm53 = vcmask 261120
    %v55 = vsel %vm53, %v47, 0
    %v58 = vsel %vm53, %v48, 0
    %60 = vmatprep.subr.mxu0 0.0
    %61 = vmatpush1.msra.mxu0 %v49
    %62 = vmatprep.subr.mxu0 0.0
    %63 = vmatpush1.msra.mxu0 %v50
    %64 = vmatprep.subr.mxu0 0.0
    %65 = vmatpush1.msra.mxu0 %v51
    %66 = vmatprep.subr.mxu0 0.0
    %67 = vmatpush1.msra.mxu0 %v52
    %68 = vmatprep.subr.mxu0 0.0
    %69 = vmatpush1.msra.mxu0 0.0
    %70 = vmatprep.subr.mxu0 0.0
    %71 = vmatpush1.msra.mxu0 0.0
    %72 = vmatprep.subr.mxu0 0.0
    %73 = vmatpush1.msra.mxu0 0.0
    %74 = vmatprep.subr.mxu0 0.0
    %75 = vmatpush1.msra.mxu0 0.0
    %76 = vmatprep.subr.mxu0 0.0
    %77 = vmatpush1.msra.mxu0 0.0
    %78 = vmatprep.subr.mxu0 0.0
    %79 = vmatpush1.msra.mxu0 0.0
    %80 = vmatprep.subr.mxu0 0.0
    %81 = vmatpush1.msra.mxu0 0.0
    %82 = vmatprep.subr.mxu0 0.0
    %83 = vmatpush1.msra.mxu0 0.0
    %84 = vmatprep.subr.mxu0 0.0
    %85 = vmatpush1.msra.mxu0 0.0
    %86 = vmatprep.subr.mxu0 0.0
    %87 = vmatpush1.msra.mxu0 0.0
    %88 = vmatprep.subr.mxu0 0.0
    %89 = vmatpush1.msra.mxu0 0.0
    %90 = vmatprep.subr.mxu0 0.0
    %91 = vmatpush1.msra.mxu0 0.0
    %92 = vmatprep.subr.mxu0 0.0
    %93 = vmatpush1.msra.mxu0 0.0
    %94 = vmatprep.subr.mxu0 0.0
    %95 = vmatpush1.msra.mxu0 0.0
    %96 = vmatprep.subr.mxu0 0.0
    %97 = vmatpush1.msra.mxu0 0.0
    %98 = vmatprep.subr.mxu0 0.0
    %99 = vmatpush1.msra.mxu0 0.0
    %100 = vmatprep.subr.mxu0 0.0
    %101 = vmatpush1.msra.mxu0 0.0
    %102 = vmatprep.subr.mxu0 0.0
    %103 = vmatpush1.msra.mxu0 0.0
    %104 = vmatprep.subr.mxu0 0.0
    %105 = vmatpush1.msra.mxu0 0.0
    %106 = vmatprep.subr.mxu0 0.0
    %107 = vmatpush1.msra.mxu0 0.0
    %108 = vmatprep.subr.mxu0 0.0
    %109 = vmatpush1.msra.mxu0 0.0
    %110 = vmatprep.subr.mxu0 0.0
    %111 = vmatpush1.msra.mxu0 0.0
    %112 = vmatprep.subr.mxu0 0.0
    %113 = vmatpush1.msra.mxu0 0.0
    %114 = vmatprep.subr.mxu0 0.0
    %115 = vmatpush1.msra.mxu0 0.0
    %116 = vmatprep.subr.mxu0 0.0
    %117 = vmatpush1.msra.mxu0 0.0
    %118 = vmatprep.subr.mxu0 0.0
    %119 = vmatpush1.msra.mxu0 0.0
    %120 = vmatprep.subr.mxu0 0.0
    %121 = vmatpush1.msra.mxu0 0.0
    %122 = vmatprep.subr.mxu0 0.0
    %123 = vmatpush1.msra.mxu0 0.0
    %124 = vmatprep.mubr.f32.mxu0 0.0
    %125 = vmatmul.mubr.f32.gmra.mrb[0].mxu0 %v55
    %v126 = vpop.f32.mrb[0].mxu0
    %v127 = vadd.f32 0.0, %v126
    %v128 = vpop.f32.mrb[0].mxu0
    %129 = vmatprep.mubr.f32.mxu0 0.0
    %130 = vmatmul.mubr.f32.gmra.mrb[0].mxu0 %v58
    %v131 = vpop.f32.mrb[0].mxu0
    %v132 = vadd.f32 0.0, %v131
    %v133 = vpop.f32.mrb[0].mxu0
    %134 = vdwg.mxu0
    %v135 = vld [vmem:[#allocation2] sm:$0xff]
    %v136 = vld [vmem:[#allocation2 + $0x8] sm:$0xff]
    %v137 = vld [vmem:[#allocation2 + $0x10] sm:$0xff]
    %v138 = vld [vmem:[#allocation2 + $0x18] sm:$0xff]
    %v139 = vld [vmem:[#allocation2 + $0x20] sm:$0xff]
    %v140 = vld [vmem:[#allocation2 + $0x28] sm:$0xff]
    %v141 = vld [vmem:[#allocation2 + $0x30] sm:$0xff]
    %v142 = vld [vmem:[#allocation2 + $0x38] sm:$0xff]
    %v143 = vld [vmem:[#allocation2 + $0x40] sm:$0x3]
    %v144 = vpack.c.bf16 %v136, %v135
    %v145 = vpack.c.bf16 %v138, %v137
    %v146 = vpack.c.bf16 %v140, %v139
    %v147 = vpack.c.bf16 %v142, %v141
    %vm148 = vcmp.lt.s32.totalorder %v36, 96
    %v149 = vsel %vm148, 0.5, 1.0
    %v150 = vsel %vm148, 0.5, 0.0
    %v151 = vmul.f32 %v127, %v149
    %v152 = vtanh.pop %v151
    %v153 = vmul.f32 %v152, %v149
    %v154 = vadd.f32 %v153, %v150
    %v155 = vmul.f32 %v154, 0.0
    %157 = vrot.lane.b32.xlu0 %v154, 32
    %v158 = vpop.permute.xlu0 %157
    %v160 = vmul.f32 %v154, %v158
    %162 = vrot.lane.b32.xlu0 %v160, 32
    %v163 = vpop.permute.xlu0 %162
    %v165 = vadd.f32 %v155, %v163
    %v166 = vtanh.pop %v165
    %168 = vrot.lane.b32.xlu0 %v166, 32
    %v169 = vpop.permute.xlu0 %168
    %v171 = vmul.f32 %v154, %v169
    %v172 = vpack.c.bf16 %v171, %v171
    %174 = vrot.lane.b32.xlu0 %v172, 64
    %v175 = vpop.permute.xlu0 %174
    %v177 = vsel %vm53, %v175, 0
    %179 = vmatprep.subr.bf16.mxu0 0
    %180 = vmatpush1.bf16.msra.mxu0 %v144
    %181 = vmatprep.subr.bf16.mxu0 0
    %182 = vmatpush1.bf16.msra.mxu0 %v145
    %183 = vmatprep.subr.bf16.mxu0 0
    %184 = vmatpush1.bf16.msra.mxu0 0
    %185 = vmatprep.subr.bf16.mxu0 0
    %186 = vmatpush1.bf16.msra.mxu0 0
    %187 = vmatprep.subr.bf16.mxu0 0
    %188 = vmatpush1.bf16.msra.mxu0 0
    %189 = vmatprep.subr.bf16.mxu0 0
    %190 = vmatpush1.bf16.msra.mxu0 0
    %191 = vmatprep.subr.bf16.mxu0 0
    %192 = vmatpush1.bf16.msra.mxu0 0
    %193 = vmatprep.subr.bf16.mxu0 0
    %194 = vmatpush1.bf16.msra.mxu0 0
    %195 = vmatprep.subr.bf16.mxu0 0
    %196 = vmatpush1.bf16.msra.mxu0 0
    %197 = vmatprep.subr.bf16.mxu0 0
    %198 = vmatpush1.bf16.msra.mxu0 0
    %199 = vmatprep.subr.bf16.mxu0 0
    %200 = vmatpush1.bf16.msra.mxu0 0
    %201 = vmatprep.subr.bf16.mxu0 0
    %202 = vmatpush1.bf16.msra.mxu0 0
    %203 = vmatprep.subr.bf16.mxu0 0
    %204 = vmatpush1.bf16.msra.mxu0 0
    %205 = vmatprep.subr.bf16.mxu0 0
    %206 = vmatpush1.bf16.msra.mxu0 0
    %207 = vmatprep.subr.bf16.mxu0 0
    %208 = vmatpush1.bf16.msra.mxu0 0
    %209 = vmatprep.subr.bf16.mxu0 0
    %210 = vmatpush1.bf16.msra.mxu0 0
    %211 = vmatprep.mubr.bf16.mxu0 0
    %212 = vmatmul.mubr.bf16.gmra.mrb[0].mxu0 %v177
    %v213 = vpop.f32.mrb[0].mxu0
    %v214 = vadd.f32 0.0, %v213
    %v215 = vpop.f32.mrb[0].mxu0
    %v216 = vpop.f32.mrb[0].mxu0
    %v217 = vpop.f32.mrb[0].mxu0
    %218 = vdwg.mxu0
    %v220 = vrot.slane %v214, 6
    %v222 = vadd.f32 %v127, %v220
    %v223 = vmul.f32 %v222, %v149
    %v224 = vtanh.pop %v223
    %v225 = vmul.f32 %v224, %v149
    %v226 = vadd.f32 %v225, %v150
    %v228 = vrot.slane %v165, 6
    %v230 = vmul.f32 %v226, %v228
    %232 = vrot.lane.b32.xlu0 %v226, 32
    %v233 = vpop.permute.xlu0 %232
    %v235 = vmul.f32 %v226, %v233
    %237 = vrot.lane.b32.xlu0 %v235, 32
    %v238 = vpop.permute.xlu0 %237
    %v240 = vadd.f32 %v230, %v238
    %v241 = vtanh.pop %v240
    %243 = vrot.lane.b32.xlu0 %v241, 32
    %v244 = vpop.permute.xlu0 %243
    %v246 = vmul.f32 %v226, %v244
    %v247 = vpack.c.bf16 %v246, %v246
    %v249 = vrot.slane %v247, 1
    %250 = vrot.lane.b32.xlu0 %v249, 64
    %v251 = vpop.permute.xlu0 %250
    %v253 = vsel %vm53, %v251, 0
    %255 = vmatprep.subr.bf16.mxu0 0
    %256 = vmatpush1.bf16.msra.mxu0 %v144
    %257 = vmatprep.subr.bf16.mxu0 0
    %258 = vmatpush1.bf16.msra.mxu0 %v145
    %259 = vmatprep.subr.bf16.mxu0 0
    %260 = vmatpush1.bf16.msra.mxu0 0
    %261 = vmatprep.subr.bf16.mxu0 0
    %262 = vmatpush1.bf16.msra.mxu0 0
    %263 = vmatprep.subr.bf16.mxu0 0
    %264 = vmatpush1.bf16.msra.mxu0 0
    %265 = vmatprep.subr.bf16.mxu0 0
    %266 = vmatpush1.bf16.msra.mxu0 0
    %267 = vmatprep.subr.bf16.mxu0 0
    %268 = vmatpush1.bf16.msra.mxu0 0
    %269 = vmatprep.subr.bf16.mxu0 0
    %270 = vmatpush1.bf16.msra.mxu0 0
    %271 = vmatprep.subr.bf16.mxu0 0
    %272 = vmatpush1.bf16.msra.mxu0 0
    %273 = vmatprep.subr.bf16.mxu0 0
    %274 = vmatpush1.bf16.msra.mxu0 0
    %275 = vmatprep.subr.bf16.mxu0 0
    %276 = vmatpush1.bf16.msra.mxu0 0
    %277 = vmatprep.subr.bf16.mxu0 0
    %278 = vmatpush1.bf16.msra.mxu0 0
    %279 = vmatprep.subr.bf16.mxu0 0
    %280 = vmatpush1.bf16.msra.mxu0 0
    %281 = vmatprep.subr.bf16.mxu0 0
    %282 = vmatpush1.bf16.msra.mxu0 0
    %283 = vmatprep.subr.bf16.mxu0 0
    %284 = vmatpush1.bf16.msra.mxu0 0
    %285 = vmatprep.subr.bf16.mxu0 0
    %286 = vmatpush1.bf16.msra.mxu0 0
    %287 = vmatprep.mubr.bf16.mxu0 0
    %288 = vmatmul.mubr.bf16.gmra.mrb[0].mxu0 %v253
    %v289 = vpop.f32.mrb[0].mxu0
    %v290 = vadd.f32 0.0, %v289
    %v291 = vpop.f32.mrb[0].mxu0
    %v292 = vpop.f32.mrb[0].mxu0
    %v293 = vpop.f32.mrb[0].mxu0
    %294 = vdwg.mxu0
    %v296 = vrot.slane %v290, 4
    %v298 = vadd.f32 %v127, %v296
    %v299 = vmul.f32 %v298, %v149
    %v300 = vtanh.pop %v299
    %v301 = vmul.f32 %v300, %v149
    %v302 = vadd.f32 %v301, %v150
    %v304 = vrot.slane %v240, 6
    %v306 = vmul.f32 %v302, %v304
    %308 = vrot.lane.b32.xlu0 %v302, 32
    %v309 = vpop.permute.xlu0 %308
    %v311 = vmul.f32 %v302, %v309
    %313 = vrot.lane.b32.xlu0 %v311, 32
    %v314 = vpop.permute.xlu0 %313
    %v316 = vadd.f32 %v306, %v314
    %v317 = vtanh.pop %v316
    %319 = vrot.lane.b32.xlu0 %v317, 32
    %v320 = vpop.permute.xlu0 %319
    %v322 = vmul.f32 %v302, %v320
    %v323 = vpack.c.bf16 %v322, %v322
    %v325 = vrot.slane %v323, 2
    %326 = vrot.lane.b32.xlu0 %v325, 64
    %v327 = vpop.permute.xlu0 %326
    %v329 = vsel %vm53, %v327, 0
    %331 = vmatprep.subr.bf16.mxu0 0
    %332 = vmatpush1.bf16.msra.mxu0 %v144
    %333 = vmatprep.subr.bf16.mxu0 0
    %334 = vmatpush1.bf16.msra.mxu0 %v145
    %335 = vmatprep.subr.bf16.mxu0 0
    %336 = vmatpush1.bf16.msra.mxu0 0
    %337 = vmatprep.subr.bf16.mxu0 0
    %338 = vmatpush1.bf16.msra.mxu0 0
    %339 = vmatprep.subr.bf16.mxu0 0
    %340 = vmatpush1.bf16.msra.mxu0 0
    %341 = vmatprep.subr.bf16.mxu0 0
    %342 = vmatpush1.bf16.msra.mxu0 0
    %343 = vmatprep.subr.bf16.mxu0 0
    %344 = vmatpush1.bf16.msra.mxu0 0
    %345 = vmatprep.subr.bf16.mxu0 0
    %346 = vmatpush1.bf16.msra.mxu0 0
    %347 = vmatprep.subr.bf16.mxu0 0
    %348 = vmatpush1.bf16.msra.mxu0 0
    %349 = vmatprep.subr.bf16.mxu0 0
    %350 = vmatpush1.bf16.msra.mxu0 0
    %351 = vmatprep.subr.bf16.mxu0 0
    %352 = vmatpush1.bf16.msra.mxu0 0
    %353 = vmatprep.subr.bf16.mxu0 0
    %354 = vmatpush1.bf16.msra.mxu0 0
    %355 = vmatprep.subr.bf16.mxu0 0
    %356 = vmatpush1.bf16.msra.mxu0 0
    %357 = vmatprep.subr.bf16.mxu0 0
    %358 = vmatpush1.bf16.msra.mxu0 0
    %359 = vmatprep.subr.bf16.mxu0 0
    %360 = vmatpush1.bf16.msra.mxu0 0
    %361 = vmatprep.subr.bf16.mxu0 0
    %362 = vmatpush1.bf16.msra.mxu0 0
    %363 = vmatprep.mubr.bf16.mxu0 0
    %364 = vmatmul.mubr.bf16.gmra.mrb[0].mxu0 %v329
    %v365 = vpop.f32.mrb[0].mxu0
    %v366 = vadd.f32 0.0, %v365
    %v367 = vpop.f32.mrb[0].mxu0
    %v368 = vpop.f32.mrb[0].mxu0
    %v369 = vpop.f32.mrb[0].mxu0
    %370 = vdwg.mxu0
    %v372 = vrot.slane %v366, 2
    %v374 = vadd.f32 %v127, %v372
    %v375 = vmul.f32 %v374, %v149
    %v376 = vtanh.pop %v375
    %v377 = vmul.f32 %v376, %v149
    %v378 = vadd.f32 %v377, %v150
    %v380 = vrot.slane %v316, 6
    %v382 = vmul.f32 %v378, %v380
    %384 = vrot.lane.b32.xlu0 %v378, 32
    %v385 = vpop.permute.xlu0 %384
    %v387 = vmul.f32 %v378, %v385
    %389 = vrot.lane.b32.xlu0 %v387, 32
    %v390 = vpop.permute.xlu0 %389
    %v392 = vadd.f32 %v382, %v390
    %v393 = vtanh.pop %v392
    %395 = vrot.lane.b32.xlu0 %v393, 32
    %v396 = vpop.permute.xlu0 %395
    %v398 = vmul.f32 %v378, %v396
    %v399 = vpack.c.bf16 %v398, %v398
    %v401 = vrot.slane %v399, 3
    %402 = vrot.lane.b32.xlu0 %v401, 64
    %v403 = vpop.permute.xlu0 %402
    %v405 = vsel %vm53, %v403, 0
    %407 = vmatprep.subr.bf16.mxu0 0
    %408 = vmatpush1.bf16.msra.mxu0 %v144
    %409 = vmatprep.subr.bf16.mxu0 0
    %410 = vmatpush1.bf16.msra.mxu0 %v145
    %411 = vmatprep.subr.bf16.mxu0 0
    %412 = vmatpush1.bf16.msra.mxu0 0
    %413 = vmatprep.subr.bf16.mxu0 0
    %414 = vmatpush1.bf16.msra.mxu0 0
    %415 = vmatprep.subr.bf16.mxu0 0
    %416 = vmatpush1.bf16.msra.mxu0 0
    %417 = vmatprep.subr.bf16.mxu0 0
    %418 = vmatpush1.bf16.msra.mxu0 0
    %419 = vmatprep.subr.bf16.mxu0 0
    %420 = vmatpush1.bf16.msra.mxu0 0
    %421 = vmatprep.subr.bf16.mxu0 0
    %422 = vmatpush1.bf16.msra.mxu0 0
    %423 = vmatprep.subr.bf16.mxu0 0
    %424 = vmatpush1.bf16.msra.mxu0 0
    %425 = vmatprep.subr.bf16.mxu0 0
    %426 = vmatpush1.bf16.msra.mxu0 0
    %427 = vmatprep.subr.bf16.mxu0 0
    %428 = vmatpush1.bf16.msra.mxu0 0
    %429 = vmatprep.subr.bf16.mxu0 0
    %430 = vmatpush1.bf16.msra.mxu0 0
    %431 = vmatprep.subr.bf16.mxu0 0
    %432 = vmatpush1.bf16.msra.mxu0 0
    %433 = vmatprep.subr.bf16.mxu0 0
    %434 = vmatpush1.bf16.msra.mxu0 0
    %435 = vmatprep.subr.bf16.mxu0 0
    %436 = vmatpush1.bf16.msra.mxu0 0
    %437 = vmatprep.subr.bf16.mxu0 0
    %438 = vmatpush1.bf16.msra.mxu0 0
    %439 = vmatprep.mubr.bf16.mxu0 0
    %440 = vmatmul.mubr.bf16.gmra.mrb[0].mxu0 %v405
    %v441 = vpop.f32.mrb[0].mxu0
    %v442 = vadd.f32 0.0, %v441
    %v443 = vpop.f32.mrb[0].mxu0
    %v444 = vpop.f32.mrb[0].mxu0
    %v445 = vpop.f32.mrb[0].mxu0
    %446 = vdwg.mxu0
    %v447 = vadd.f32 %v132, %v442
    %v448 = vmul.f32 %v447, %v149
    %v449 = vtanh.pop %v448
    %v450 = vmul.f32 %v449, %v149
    %v451 = vadd.f32 %v450, %v150
    %v453 = vrot.slane %v392, 6
    %v455 = vmul.f32 %v451, %v453
    %457 = vrot.lane.b32.xlu0 %v451, 32
    %v458 = vpop.permute.xlu0 %457
    %v460 = vmul.f32 %v451, %v458
    %462 = vrot.lane.b32.xlu0 %v460, 32
    %v463 = vpop.permute.xlu0 %462
    %v465 = vadd.f32 %v455, %v463
    %v466 = vtanh.pop %v465
    %468 = vrot.lane.b32.xlu0 %v466, 32
    %v469 = vpop.permute.xlu0 %468
    %v471 = vmul.f32 %v451, %v469
    %v472 = vpack.c.bf16 %v471, %v471
    %474 = vrot.lane.b32.xlu0 %v472, 64
    %v475 = vpop.permute.xlu0 %474
    %v477 = vsel %vm53, %v475, 0
    %479 = vmatprep.subr.bf16.mxu0 0
    %480 = vmatpush1.bf16.msra.mxu0 %v144
    %481 = vmatprep.subr.bf16.mxu0 0
    %482 = vmatpush1.bf16.msra.mxu0 %v145
    %483 = vmatprep.subr.bf16.mxu0 0
    %484 = vmatpush1.bf16.msra.mxu0 0
    %485 = vmatprep.subr.bf16.mxu0 0
    %486 = vmatpush1.bf16.msra.mxu0 0
    %487 = vmatprep.subr.bf16.mxu0 0
    %488 = vmatpush1.bf16.msra.mxu0 0
    %489 = vmatprep.subr.bf16.mxu0 0
    %490 = vmatpush1.bf16.msra.mxu0 0
    %491 = vmatprep.subr.bf16.mxu0 0
    %492 = vmatpush1.bf16.msra.mxu0 0
    %493 = vmatprep.subr.bf16.mxu0 0
    %494 = vmatpush1.bf16.msra.mxu0 0
    %495 = vmatprep.subr.bf16.mxu0 0
    %496 = vmatpush1.bf16.msra.mxu0 0
    %497 = vmatprep.subr.bf16.mxu0 0
    %498 = vmatpush1.bf16.msra.mxu0 0
    %499 = vmatprep.subr.bf16.mxu0 0
    %500 = vmatpush1.bf16.msra.mxu0 0
    %501 = vmatprep.subr.bf16.mxu0 0
    %502 = vmatpush1.bf16.msra.mxu0 0
    %503 = vmatprep.subr.bf16.mxu0 0
    %504 = vmatpush1.bf16.msra.mxu0 0
    %505 = vmatprep.subr.bf16.mxu0 0
    %506 = vmatpush1.bf16.msra.mxu0 0
    %507 = vmatprep.subr.bf16.mxu0 0
    %508 = vmatpush1.bf16.msra.mxu0 0
    %509 = vmatprep.subr.bf16.mxu0 0
    %510 = vmatpush1.bf16.msra.mxu0 0
    %511 = vmatprep.mubr.bf16.mxu0 0
    %512 = vmatmul.mubr.bf16.gmra.mrb[0].mxu0 %v477
    %v513 = vpop.f32.mrb[0].mxu0
    %v514 = vadd.f32 0.0, %v513
    %v515 = vpop.f32.mrb[0].mxu0
    %v516 = vpop.f32.mrb[0].mxu0
    %v517 = vpop.f32.mrb[0].mxu0
    %518 = vdwg.mxu0
    %v520 = vrot.slane %v514, 6
    %v522 = vadd.f32 %v132, %v520
    %v523 = vmul.f32 %v522, %v149
    %v524 = vtanh.pop %v523
    %v525 = vmul.f32 %v524, %v149
    %v526 = vadd.f32 %v525, %v150
    %v528 = vrot.slane %v465, 6
    %v530 = vmul.f32 %v526, %v528
    %532 = vrot.lane.b32.xlu0 %v526, 32
    %v533 = vpop.permute.xlu0 %532
    %v535 = vmul.f32 %v526, %v533
    %537 = vrot.lane.b32.xlu0 %v535, 32
    %v538 = vpop.permute.xlu0 %537
    %v540 = vadd.f32 %v530, %v538
    %v541 = vtanh.pop %v540
    %543 = vrot.lane.b32.xlu0 %v541, 32
    %v544 = vpop.permute.xlu0 %543
    %v546 = vmul.f32 %v526, %v544
    %v547 = vpack.c.bf16 %v546, %v546
    %v549 = vrot.slane %v547, 1
    %550 = vrot.lane.b32.xlu0 %v549, 64
    %v551 = vpop.permute.xlu0 %550
    %v553 = vsel %vm53, %v551, 0
    %555 = vmatprep.subr.bf16.mxu0 0
    %556 = vmatpush1.bf16.msra.mxu0 %v144
    %557 = vmatprep.subr.bf16.mxu0 0
    %558 = vmatpush1.bf16.msra.mxu0 %v145
    %559 = vmatprep.subr.bf16.mxu0 0
    %560 = vmatpush1.bf16.msra.mxu0 0
    %561 = vmatprep.subr.bf16.mxu0 0
    %562 = vmatpush1.bf16.msra.mxu0 0
    %563 = vmatprep.subr.bf16.mxu0 0
    %564 = vmatpush1.bf16.msra.mxu0 0
    %565 = vmatprep.subr.bf16.mxu0 0
    %566 = vmatpush1.bf16.msra.mxu0 0
    %567 = vmatprep.subr.bf16.mxu0 0
    %568 = vmatpush1.bf16.msra.mxu0 0
    %569 = vmatprep.subr.bf16.mxu0 0
    %570 = vmatpush1.bf16.msra.mxu0 0
    %571 = vmatprep.subr.bf16.mxu0 0
    %572 = vmatpush1.bf16.msra.mxu0 0
    %573 = vmatprep.subr.bf16.mxu0 0
    %574 = vmatpush1.bf16.msra.mxu0 0
    %575 = vmatprep.subr.bf16.mxu0 0
    %576 = vmatpush1.bf16.msra.mxu0 0
    %577 = vmatprep.subr.bf16.mxu0 0
    %578 = vmatpush1.bf16.msra.mxu0 0
    %579 = vmatprep.subr.bf16.mxu0 0
    %580 = vmatpush1.bf16.msra.mxu0 0
    %581 = vmatprep.subr.bf16.mxu0 0
    %582 = vmatpush1.bf16.msra.mxu0 0
    %583 = vmatprep.subr.bf16.mxu0 0
    %584 = vmatpush1.bf16.msra.mxu0 0
    %585 = vmatprep.subr.bf16.mxu0 0
    %586 = vmatpush1.bf16.msra.mxu0 0
    %587 = vmatprep.mubr.bf16.mxu0 0
    %588 = vmatmul.mubr.bf16.gmra.mrb[0].mxu0 %v553
    %v589 = vpop.f32.mrb[0].mxu0
    %v590 = vadd.f32 0.0, %v589
    %v591 = vpop.f32.mrb[0].mxu0
    %v592 = vpop.f32.mrb[0].mxu0
    %v593 = vpop.f32.mrb[0].mxu0
    %594 = vdwg.mxu0
    %v596 = vrot.slane %v590, 4
    %v598 = vadd.f32 %v132, %v596
    %v599 = vmul.f32 %v598, %v149
    %v600 = vtanh.pop %v599
    %v601 = vmul.f32 %v600, %v149
    %v602 = vadd.f32 %v601, %v150
    %v604 = vrot.slane %v540, 6
    %v606 = vmul.f32 %v602, %v604
    %608 = vrot.lane.b32.xlu0 %v602, 32
    %v609 = vpop.permute.xlu0 %608
    %v611 = vmul.f32 %v602, %v609
    %613 = vrot.lane.b32.xlu0 %v611, 32
    %v614 = vpop.permute.xlu0 %613
    %v616 = vadd.f32 %v606, %v614
    %v617 = vtanh.pop %v616
    %619 = vrot.lane.b32.xlu0 %v617, 32
    %v620 = vpop.permute.xlu0 %619
    %v622 = vmul.f32 %v602, %v620
    %v623 = vpack.c.bf16 %v622, %v622
    %v625 = vrot.slane %v623, 2
    %626 = vrot.lane.b32.xlu0 %v625, 64
    %v627 = vpop.permute.xlu0 %626
    %v629 = vsel %vm53, %v627, 0
    %631 = vmatprep.subr.bf16.mxu0 0
    %632 = vmatpush1.bf16.msra.mxu0 %v144
    %633 = vmatprep.subr.bf16.mxu0 0
    %634 = vmatpush1.bf16.msra.mxu0 %v145
    %635 = vmatprep.subr.bf16.mxu0 0
    %636 = vmatpush1.bf16.msra.mxu0 0
    %637 = vmatprep.subr.bf16.mxu0 0
    %638 = vmatpush1.bf16.msra.mxu0 0
    %639 = vmatprep.subr.bf16.mxu0 0
    %640 = vmatpush1.bf16.msra.mxu0 0
    %641 = vmatprep.subr.bf16.mxu0 0
    %642 = vmatpush1.bf16.msra.mxu0 0
    %643 = vmatprep.subr.bf16.mxu0 0
    %644 = vmatpush1.bf16.msra.mxu0 0
    %645 = vmatprep.subr.bf16.mxu0 0
    %646 = vmatpush1.bf16.msra.mxu0 0
    %647 = vmatprep.subr.bf16.mxu0 0
    %648 = vmatpush1.bf16.msra.mxu0 0
    %649 = vmatprep.subr.bf16.mxu0 0
    %650 = vmatpush1.bf16.msra.mxu0 0
    %651 = vmatprep.subr.bf16.mxu0 0
    %652 = vmatpush1.bf16.msra.mxu0 0
    %653 = vmatprep.subr.bf16.mxu0 0
    %654 = vmatpush1.bf16.msra.mxu0 0
    %655 = vmatprep.subr.bf16.mxu0 0
    %656 = vmatpush1.bf16.msra.mxu0 0
    %657 = vmatprep.subr.bf16.mxu0 0
    %658 = vmatpush1.bf16.msra.mxu0 0
    %659 = vmatprep.subr.bf16.mxu0 0
    %660 = vmatpush1.bf16.msra.mxu0 0
    %661 = vmatprep.subr.bf16.mxu0 0
    %662 = vmatpush1.bf16.msra.mxu0 0
    %663 = vmatprep.mubr.bf16.mxu0 0
    %664 = vmatmul.mubr.bf16.gmra.mrb[0].mxu0 %v629
    %v665 = vpop.f32.mrb[0].mxu0
    %v666 = vadd.f32 0.0, %v665
    %v667 = vpop.f32.mrb[0].mxu0
    %v668 = vpop.f32.mrb[0].mxu0
    %v669 = vpop.f32.mrb[0].mxu0
    %670 = vdwg.mxu0
    %v672 = vrot.slane %v666, 2
    %v674 = vadd.f32 %v132, %v672
    %v675 = vmul.f32 %v674, %v149
    %v676 = vtanh.pop %v675
    %v677 = vmul.f32 %v676, %v149
    %v678 = vadd.f32 %v677, %v150
    %v680 = vrot.slane %v616, 6
    %v682 = vmul.f32 %v678, %v680
    %684 = vrot.lane.b32.xlu0 %v678, 32
    %v685 = vpop.permute.xlu0 %684
    %v687 = vmul.f32 %v678, %v685
    %689 = vrot.lane.b32.xlu0 %v687, 32
    %v690 = vpop.permute.xlu0 %689
    %v692 = vadd.f32 %v682, %v690
    %v693 = vtanh.pop %v692
    %695 = vrot.lane.b32.xlu0 %v693, 32
    %v696 = vpop.permute.xlu0 %695
    %v698 = vmul.f32 %v678, %v696
    %v699 = vpack.c.bf16 %v698, %v698
    %v700 = vld [vmem:[%s3] sm:$0x3]
    %702 = vset.pattern.permute.xlu0 0
    %703 = vperm.xlu0 %702, %v700
    %v704 = vpop.permute.xlu0 %703
    %v706 = vlaneseq
    %v707 = vshrl.u32 %v706, 7
    %v708 = vsub.s32 0, %v707
    %v709 = vrot.slane %v143, %v708
    %v710 = vmul.f32 %v704, %v709
    %v712 = vrot.slane %v699, 3
    %713 = vrot.lane.b32.xlu0 %v712, 64
    %v714 = vpop.permute.xlu0 %713
    %v716 = vsel %vm53, %v714, 0
    %718 = vmatprep.subr.bf16.mxu0 0
    %719 = vmatpush1.bf16.msra.mxu0 %v146
    %720 = vmatprep.subr.bf16.mxu0 0
    %721 = vmatpush1.bf16.msra.mxu0 %v147
    %722 = vmatprep.subr.bf16.mxu0 0
    %723 = vmatpush1.bf16.msra.mxu0 0
    %724 = vmatprep.subr.bf16.mxu0 0
    %725 = vmatpush1.bf16.msra.mxu0 0
    %726 = vmatprep.subr.bf16.mxu0 0
    %727 = vmatpush1.bf16.msra.mxu0 0
    %728 = vmatprep.subr.bf16.mxu0 0
    %729 = vmatpush1.bf16.msra.mxu0 0
    %730 = vmatprep.subr.bf16.mxu0 0
    %731 = vmatpush1.bf16.msra.mxu0 0
    %732 = vmatprep.subr.bf16.mxu0 0
    %733 = vmatpush1.bf16.msra.mxu0 0
    %734 = vmatprep.subr.bf16.mxu0 0
    %735 = vmatpush1.bf16.msra.mxu0 0
    %736 = vmatprep.subr.bf16.mxu0 0
    %737 = vmatpush1.bf16.msra.mxu0 0
    %738 = vmatprep.subr.bf16.mxu0 0
    %739 = vmatpush1.bf16.msra.mxu0 0
    %740 = vmatprep.subr.bf16.mxu0 0
    %741 = vmatpush1.bf16.msra.mxu0 0
    %742 = vmatprep.subr.bf16.mxu0 0
    %743 = vmatpush1.bf16.msra.mxu0 0
    %744 = vmatprep.subr.bf16.mxu0 0
    %745 = vmatpush1.bf16.msra.mxu0 0
    %746 = vmatprep.subr.bf16.mxu0 0
    %747 = vmatpush1.bf16.msra.mxu0 0
    %748 = vmatprep.subr.bf16.mxu0 0
    %749 = vmatpush1.bf16.msra.mxu0 0
    %750 = vmatprep.mubr.bf16.mxu0 0
    %751 = vmatmul.mubr.bf16.gmra.mrb[0].mxu0 %v716
    %v752 = vpop.f32.mrb[0].mxu0
    %v753 = vadd.f32 %v710, %v752
    %v754 = vpop.f32.mrb[0].mxu0
    %v755 = vpop.f32.mrb[0].mxu0
    %v756 = vpop.f32.mrb[0].mxu0
    %757 = vdwg.mxu0
    %v758 = vlaneseq
    %v759 = vshrl.u32 %v758, 7
    %v760 = vsub.s32 1, %v759
    %v761 = vrot.slane %v143, %v760
    %v762 = vadd.f32 %v753, %v761
    %763 = vst [vmem:[#allocation5] sm:$0x3] %v762
    // Predicated region
    $region22: #{_lambda_.1} parent=1 // pred_check
      _
    $region23: #{_lambda_.1} parent=1 // pred_check_branch
      %765 = sbr.rel (0) target = $region25
    $region24: #{_lambda_.1} parent=1 // pred_region
      %s767 = ssub.s32 32, 32
      %768 = vsyncadd [#allocation4], %s767
      %s770 = sshll.u32 [#allocation5], 4
      %s771 = int_to_ptr.vmem [resolvable:$true] %s770
      %773 = dma.vmem_to_hbm [thread:$0]  %s771, 32, %s4, [#allocation4]
    $region25: #{_lambda_.1} parent=1 // pred_fallthru
      _
    // Predicated region
    $region26: #{_lambda_.1} parent=1 // pred_check
      _
    $region27: #{_lambda_.1} parent=1 // pred_check_branch
      %775 = sbr.rel (0) target = $region29
    $region28: #{_lambda_.1} parent=1 // pred_region
      %776 = dma.done [#allocation4], 32
    $region29: #{_lambda_.1} parent=1 // pred_fallthru
      _
    %777 = vsyncpa [#allocation3], 1
    %778 = vsyncpa [#allocation4], 1

</llo_original>
